<compile_context>
chip_gen: v5e
topology: v5e:2x2
jax: 0.10.0
libtpu: 0.0.40
codegen_flags: <defaults>
</compile_context>

<pallas_src>
import functools

import jax
import jax.numpy as jnp
from jax.experimental import pallas as pl
from jax.experimental.pallas import tpu as pltpu

BN_EPS = 1e-5
_VMEM_LIMIT_BYTES = 32 * 1024 * 1024  # safe headroom on v5e/v6e (128 MiB) and v7x (64 MiB)


def _pick_tile_l(l, max_tile=512):
    """L-tile for pass 2: whole L if small, else a multiple of 128 dividing L."""
    if l <= max_tile:
        return l
    for t in range(max_tile, 127, -128):      # 512, 384, 256, 128
        if l % t == 0:
            return t
    return l  # fallback: single tile (still correct, just less pipelining)


def _conv_stats_kernel(x_ref, w_ref, b_ref, y_ref, sum_ref, sumsq_ref):
    # x_ref:     (1, Cin, L + 2*pad)  one padded sample (length on lanes)
    # w_ref:     (K, Cout, Cin)       conv weight, tap-major
    # b_ref:     (1, Cout, 1)         conv bias (f32)
    # y_ref:     (1, Cout, L)         conv output (f32) for pass 2
    # sum_ref:   (1, Cout, 1)         per-sample per-channel sum
    # sumsq_ref: (1, Cout, 1)         per-sample per-channel sum of squares
    k_taps = w_ref.shape[0]
    c_out, l_out = y_ref.shape[1], y_ref.shape[2]

    # Load the padded sample once; the K tap views are static lane-offset
    # slices of the same resident data (no HBM re-read, no dynamic slicing).
    x_full = x_ref[0]                                       # (Cin, L + 2*pad)

    acc = jnp.zeros((c_out, l_out), jnp.float32)
    for k in range(k_taps):                                 # static, unrolled
        xs = x_full[:, k:k + l_out]                         # (Cin, L)
        # Inputs stay in their native dtype (bf16 would hit the bf16 MXU);
        # accumulation is always f32.  For tiny Cin/Cout Mosaic may lower this
        # to VPU FMAs, which is fine (conv is not the bottleneck here).
        acc = acc + jnp.dot(w_ref[k], xs, preferred_element_type=jnp.float32)
    acc = acc + b_ref[0].astype(jnp.float32)                # (Cout, 1) broadcast

    y_ref[0] = acc                                          # f32, lane-dense store

    # One-pass BN statistics: per-channel sum and sum of squares over L.
    sum_ref[0] = jnp.sum(acc, axis=1, keepdims=True)        # (Cout, 1)
    sumsq_ref[0] = jnp.sum(acc * acc, axis=1, keepdims=True)


def _bn_relu_kernel(y_ref, scale_ref, shift_ref, o_ref):
    # y_ref: (1, Cout, TILE_L) f32;  scale/shift: (1, Cout, 1) f32
    o_ref[0] = jnp.maximum(
        y_ref[0] * scale_ref[0] + shift_ref[0], 0.0
    ).astype(o_ref.dtype)


def block_forward(x_ncl, weight, bias, gamma, beta, kernel_size=3):
    """Pallas implementation of Block.forward.

    x_ncl:  (N, Cin, L)      -- PyTorch NCL layout (kept end-to-end)
    weight: (Cout, Cin, K)   -- PyTorch Conv1d weight layout
    bias, gamma, beta: (Cout,)
    returns (N, Cout, L)
    """
    n, c_in, l = x_ncl.shape
    c_out = weight.shape[0]
    pad = (kernel_size - 1) // 2
    l_pad = l + 2 * pad
    itemsize = x_ncl.dtype.itemsize

    # Only the (cheap, small) length-axis halo pad; no transposes needed.
    x_pad = jnp.pad(x_ncl, ((0, 0), (0, 0), (pad, pad)))
    w_t = jnp.transpose(weight, (2, 0, 1))                  # (K, Cout, Cin)
    b_r = bias.reshape(1, c_out, 1).astype(jnp.float32)

    # ---------------- Pass 1: conv + bias + per-sample stats ----------------
    flops1 = 2 * kernel_size * c_in * c_out * n * l
    bytes1 = ((n * c_in * l_pad + kernel_size * c_out * c_in) * itemsize
              + (n * c_out * l + 2 * n * c_out + c_out) * 4)

    y, sums, sumsqs = pl.pallas_call(
        _conv_stats_kernel,
        grid=(n,),
        in_specs=[
            pl.BlockSpec((1, c_in, l_pad), lambda i: (i, 0, 0)),         # x (resident per sample)
            pl.BlockSpec((kernel_size, c_out, c_in), lambda i: (0, 0, 0)),
            pl.BlockSpec((1, c_out, 1), lambda i: (0, 0, 0)),
        ],
        out_specs=[
            pl.BlockSpec((1, c_out, l), lambda i: (i, 0, 0)),            # conv output (f32)
            pl.BlockSpec((1, c_out, 1), lambda i: (i, 0, 0)),            # per-sample sum
            pl.BlockSpec((1, c_out, 1), lambda i: (i, 0, 0)),            # per-sample sumsq
        ],
        out_shape=[
            jax.ShapeDtypeStruct((n, c_out, l), jnp.float32),
            jax.ShapeDtypeStruct((n, c_out, 1), jnp.float32),
            jax.ShapeDtypeStruct((n, c_out, 1), jnp.float32),
        ],
        compiler_params=pltpu.CompilerParams(
            dimension_semantics=("parallel",),
            vmem_limit_bytes=_VMEM_LIMIT_BYTES),
        cost_estimate=pl.CostEstimate(
            flops=flops1, transcendentals=0, bytes_accessed=bytes1),
    )(x_pad, w_t, b_r)

    # --------- Tiny cross-sample combine; fold BN into scale/shift ----------
    count = n * l
    mean = jnp.sum(sums, axis=0) / count                                 # (Cout, 1)
    var = jnp.maximum(jnp.sum(sumsqs, axis=0) / count - mean * mean, 0.0)
    inv_std = jax.lax.rsqrt(var + BN_EPS)
    g = gamma.reshape(c_out, 1).astype(jnp.float32)
    scale = (g * inv_std).reshape(1, c_out, 1)
    shift = (beta.reshape(c_out, 1).astype(jnp.float32)
             - mean * g * inv_std).reshape(1, c_out, 1)

    # ------------- Pass 2: normalize + ReLU, tiled over (N, L) --------------
    tile_l = _pick_tile_l(l)
    num_l = l // tile_l
    flops2 = 3 * n * c_out * l
    bytes2 = n * c_out * l * (4 + itemsize) + 2 * c_out * 4

    out = pl.pallas_call(
        _bn_relu_kernel,
        grid=(n, num_l),
        in_specs=[
            pl.BlockSpec((1, c_out, tile_l), lambda i, j: (i, 0, j)),    # conv output tile
            pl.BlockSpec((1, c_out, 1), lambda i, j: (0, 0, 0)),         # scale
            pl.BlockSpec((1, c_out, 1), lambda i, j: (0, 0, 0)),         # shift
        ],
        out_specs=pl.BlockSpec((1, c_out, tile_l), lambda i, j: (i, 0, j)),
        out_shape=jax.ShapeDtypeStruct((n, c_out, l), x_ncl.dtype),
        compiler_params=pltpu.CompilerParams(
            dimension_semantics=("parallel", "parallel"),
            vmem_limit_bytes=_VMEM_LIMIT_BYTES),
        cost_estimate=pl.CostEstimate(
            flops=flops2, transcendentals=0, bytes_accessed=bytes2),
    )(y, scale, shift)

    return out


def _reference_forward(x_ncl, weight, bias, gamma, beta, kernel_size=3):
    """Pure-JAX reference (mirrors PyTorch Conv1d + BatchNorm1d(train) + ReLU)."""
    pad = (kernel_size - 1) // 2
    y = jax.lax.conv_general_dilated(
        x_ncl.astype(jnp.float32),
        weight.astype(jnp.float32),
        window_strides=(1,),
        padding=[(pad, pad)],
        dimension_numbers=("NCH", "OIH", "NCH"),
    ) + bias.reshape(1, -1, 1)
    mean = jnp.mean(y, axis=(0, 2), keepdims=True)
    var = jnp.mean((y - mean) ** 2, axis=(0, 2), keepdims=True)
    y = (y - mean) * jax.lax.rsqrt(var + BN_EPS)
    y = y * gamma.reshape(1, -1, 1) + beta.reshape(1, -1, 1)
    return jnp.maximum(y, 0.0).astype(x_ncl.dtype)


if __name__ == "__main__":
    # Small shapes consistent with the module: Conv1d so input is (N, Cin, L).
    N, C_IN, C_OUT, L, K = 2, 4, 8, 16, 3

    key = jax.random.PRNGKey(0)
    kx, kw, kb = jax.random.split(key, 3)

    x = jax.random.normal(kx, (N, C_IN, L), dtype=jnp.float32)

    # Deterministic parameter init (shapes per nn.Conv1d / nn.BatchNorm1d).
    fan_in = C_IN * K
    bound = 1.0 / (fan_in ** 0.5)
    weight = jax.random.uniform(kw, (C_OUT, C_IN, K), jnp.float32, -bound, bound)
    bias = jax.random.uniform(kb, (C_OUT,), jnp.float32, -bound, bound)
    gamma = jnp.ones((C_OUT,), jnp.float32)
    beta = jnp.zeros((C_OUT,), jnp.float32)

    fwd = jax.jit(functools.partial(block_forward, kernel_size=K))
    out = jax.block_until_ready(fwd(x, weight, bias, gamma, beta))

    ref = jax.block_until_ready(
        _reference_forward(x, weight, bias, gamma, beta, kernel_size=K)
    )
    assert out.shape == (N, C_OUT, L)
    assert jnp.allclose(out, ref, atol=1e-4, rtol=1e-4), "mismatch vs JAX reference"

    print("KERNEL_OK")
</pallas_src>

<mosaic_0001>
module attributes {stable_mosaic.version = 11 : i64} {
  func.func @_conv_stats_kernel(%arg0: i32, %arg1: memref<1x4x18xf32, #tpu.memory_space<vmem>>, %arg2: memref<3x8x4xf32, #tpu.memory_space<vmem>>, %arg3: memref<1x8x1xf32, #tpu.memory_space<vmem>>, %arg4: memref<1x8x16xf32, #tpu.memory_space<vmem>>, %arg5: memref<1x8x1xf32, #tpu.memory_space<vmem>>, %arg6: memref<1x8x1xf32, #tpu.memory_space<vmem>>) attributes {dimension_semantics = [#tpu.dimension_semantics<parallel>], iteration_bounds = array<i64: 2>, scalar_prefetch = 0 : i64, scratch_operands = 0 : i64, tpu.core_type = #tpu.core_type<tc>, window_params = [{transform_indices = @transform_0, window_bounds = array<i64: 1, 4, 18>}, {pipeline_mode = #tpu.pipeline_mode<synchronous>, transform_indices = @transform_1, window_bounds = array<i64: 3, 8, 4>}, {pipeline_mode = #tpu.pipeline_mode<synchronous>, transform_indices = @transform_2, window_bounds = array<i64: 1, 8, 1>}, {transform_indices = @transform_3, window_bounds = array<i64: 1, 8, 16>}, {transform_indices = @transform_4, window_bounds = array<i64: 1, 8, 1>}, {transform_indices = @transform_5, window_bounds = array<i64: 1, 8, 1>}]} {
    %c0 = arith.constant 0 : index
    %c0_0 = arith.constant 0 : index
    %c0_1 = arith.constant 0 : index
    %0 = vector.load %arg1[%c0, %c0_0, %c0_1] : memref<1x4x18xf32, #tpu.memory_space<vmem>>, vector<1x4x18xf32>
    %1 = vector.shape_cast %0 : vector<1x4x18xf32> to vector<4x18xf32>
    %cst = arith.constant 0.000000e+00 : f32
    %2 = vector.broadcast %cst : f32 to vector<8x16xf32>
    %3 = vector.extract_strided_slice %1 {offsets = [0, 0], sizes = [4, 16], strides = [1, 1]} : vector<4x18xf32> to vector<4x16xf32>
    %c0_2 = arith.constant 0 : index
    %c0_3 = arith.constant 0 : index
    %c0_4 = arith.constant 0 : index
    %4 = vector.load %arg2[%c0_2, %c0_3, %c0_4] : memref<3x8x4xf32, #tpu.memory_space<vmem>>, vector<1x8x4xf32>
    %5 = vector.shape_cast %4 : vector<1x8x4xf32> to vector<8x4xf32>
    %cst_5 = arith.constant dense<0.000000e+00> : vector<8x16xf32>
    %6 = tpu.matmul %5, %3, %cst_5 {dimension_numbers = #tpu.dot_dimension_numbers<[1], [0], [0], [1], [0, 0, 1, 1], [], []>} : vector<8x4xf32>, vector<4x16xf32>, vector<8x16xf32> -> vector<8x16xf32>
    %7 = arith.addf %2, %6 : vector<8x16xf32>
    %8 = vector.extract_strided_slice %1 {offsets = [0, 1], sizes = [4, 16], strides = [1, 1]} : vector<4x18xf32> to vector<4x16xf32>
    %c1 = arith.constant 1 : index
    %c0_6 = arith.constant 0 : index
    %c0_7 = arith.constant 0 : index
    %9 = vector.load %arg2[%c1, %c0_6, %c0_7] : memref<3x8x4xf32, #tpu.memory_space<vmem>>, vector<1x8x4xf32>
    %10 = vector.shape_cast %9 : vector<1x8x4xf32> to vector<8x4xf32>
    %cst_8 = arith.constant dense<0.000000e+00> : vector<8x16xf32>
    %11 = tpu.matmul %10, %8, %cst_8 {dimension_numbers = #tpu.dot_dimension_numbers<[1], [0], [0], [1], [0, 0, 1, 1], [], []>} : vector<8x4xf32>, vector<4x16xf32>, vector<8x16xf32> -> vector<8x16xf32>
    %12 = arith.addf %7, %11 : vector<8x16xf32>
    %13 = vector.extract_strided_slice %1 {offsets = [0, 2], sizes = [4, 16], strides = [1, 1]} : vector<4x18xf32> to vector<4x16xf32>
    %c2 = arith.constant 2 : index
    %c0_9 = arith.constant 0 : index
    %c0_10 = arith.constant 0 : index
    %14 = vector.load %arg2[%c2, %c0_9, %c0_10] : memref<3x8x4xf32, #tpu.memory_space<vmem>>, vector<1x8x4xf32>
    %15 = vector.shape_cast %14 : vector<1x8x4xf32> to vector<8x4xf32>
    %cst_11 = arith.constant dense<0.000000e+00> : vector<8x16xf32>
    %16 = tpu.matmul %15, %13, %cst_11 {dimension_numbers = #tpu.dot_dimension_numbers<[1], [0], [0], [1], [0, 0, 1, 1], [], []>} : vector<8x4xf32>, vector<4x16xf32>, vector<8x16xf32> -> vector<8x16xf32>
    %17 = arith.addf %12, %16 : vector<8x16xf32>
    %c0_12 = arith.constant 0 : index
    %c0_13 = arith.constant 0 : index
    %c0_14 = arith.constant 0 : index
    %18 = vector.load %arg3[%c0_12, %c0_13, %c0_14] : memref<1x8x1xf32, #tpu.memory_space<vmem>>, vector<1x8x1xf32>
    %19 = vector.shape_cast %18 : vector<1x8x1xf32> to vector<8x1xf32>
    %20 = vector.broadcast %19 : vector<8x1xf32> to vector<8x16xf32>
    %21 = arith.addf %17, %20 : vector<8x16xf32>
    %c0_15 = arith.constant 0 : index
    %c0_16 = arith.constant 0 : index
    %c0_17 = arith.constant 0 : index
    %22 = vector.load %arg4[%c0_15, %c0_16, %c0_17] : memref<1x8x16xf32, #tpu.memory_space<vmem>>, vector<1x8x16xf32>
    %23 = vector.shape_cast %22 : vector<1x8x16xf32> to vector<8x16xf32>
    %24 = vector.shape_cast %21 : vector<8x16xf32> to vector<1x8x16xf32>
    tpu.vector_store %arg4[%c0_15, %c0_16, %c0_17], %24 {strides = array<i32>} : memref<1x8x16xf32, #tpu.memory_space<vmem>>, vector<1x8x16xf32>,
    %cst_18 = arith.constant dense<0.000000e+00> : vector<8xf32>
    %25 = vector.multi_reduction <add>, %21, %cst_18 [1] : vector<8x16xf32> to vector<8xf32>
    %26 = vector.shape_cast %25 : vector<8xf32> to vector<8x1xf32>
    %c0_19 = arith.constant 0 : index
    %c0_20 = arith.constant 0 : index
    %c0_21 = arith.constant 0 : index
    %27 = vector.load %arg5[%c0_19, %c0_20, %c0_21] : memref<1x8x1xf32, #tpu.memory_space<vmem>>, vector<1x8x1xf32>
    %28 = vector.shape_cast %27 : vector<1x8x1xf32> to vector<8x1xf32>
    %29 = vector.shape_cast %26 : vector<8x1xf32> to vector<1x8x1xf32>
    tpu.vector_store %arg5[%c0_19, %c0_20, %c0_21], %29 {strides = array<i32>} : memref<1x8x1xf32, #tpu.memory_space<vmem>>, vector<1x8x1xf32>,
    %30 = arith.mulf %21, %21 : vector<8x16xf32>
    %cst_22 = arith.constant dense<0.000000e+00> : vector<8xf32>
    %31 = vector.multi_reduction <add>, %30, %cst_22 [1] : vector<8x16xf32> to vector<8xf32>
    %32 = vector.shape_cast %31 : vector<8xf32> to vector<8x1xf32>
    %c0_23 = arith.constant 0 : index
    %c0_24 = arith.constant 0 : index
    %c0_25 = arith.constant 0 : index
    %33 = vector.load %arg6[%c0_23, %c0_24, %c0_25] : memref<1x8x1xf32, #tpu.memory_space<vmem>>, vector<1x8x1xf32>
    %34 = vector.shape_cast %33 : vector<1x8x1xf32> to vector<8x1xf32>
    %35 = vector.shape_cast %32 : vector<8x1xf32> to vector<1x8x1xf32>
    tpu.vector_store %arg6[%c0_23, %c0_24, %c0_25], %35 {strides = array<i32>} : memref<1x8x1xf32, #tpu.memory_space<vmem>>, vector<1x8x1xf32>,
    return
  }
  func.func @transform_0(%arg0: i32) -> (i32, i32, i32) {
    %c0_i32 = arith.constant 0 : i32
    %c0_i32_0 = arith.constant 0 : i32
    %c0_i32_1 = arith.constant 0 : i32
    return %arg0, %c0_i32, %c0_i32_0 : i32, i32, i32
  }
  func.func @transform_1(%arg0: i32) -> (i32, i32, i32) {
    %c0_i32 = arith.constant 0 : i32
    %c0_i32_0 = arith.constant 0 : i32
    %c0_i32_1 = arith.constant 0 : i32
    %c0_i32_2 = arith.constant 0 : i32
    return %c0_i32, %c0_i32_0, %c0_i32_1 : i32, i32, i32
  }
  func.func @transform_2(%arg0: i32) -> (i32, i32, i32) {
    %c0_i32 = arith.constant 0 : i32
    %c0_i32_0 = arith.constant 0 : i32
    %c0_i32_1 = arith.constant 0 : i32
    %c0_i32_2 = arith.constant 0 : i32
    return %c0_i32, %c0_i32_0, %c0_i32_1 : i32, i32, i32
  }
  func.func @transform_3(%arg0: i32) -> (i32, i32, i32) {
    %c0_i32 = arith.constant 0 : i32
    %c0_i32_0 = arith.constant 0 : i32
    %c0_i32_1 = arith.constant 0 : i32
    return %arg0, %c0_i32, %c0_i32_0 : i32, i32, i32
  }
  func.func @transform_4(%arg0: i32) -> (i32, i32, i32) {
    %c0_i32 = arith.constant 0 : i32
    %c0_i32_0 = arith.constant 0 : i32
    %c0_i32_1 = arith.constant 0 : i32
    return %arg0, %c0_i32, %c0_i32_0 : i32, i32, i32
  }
  func.func @transform_5(%arg0: i32) -> (i32, i32, i32) {
    %c0_i32 = arith.constant 0 : i32
    %c0_i32_0 = arith.constant 0 : i32
    %c0_i32_1 = arith.constant 0 : i32
    return %arg0, %c0_i32, %c0_i32_0 : i32, i32, i32
  }
}

module attributes {stable_mosaic.version = 11 : i64} {
  func.func @_bn_relu_kernel(%arg0: i32, %arg1: i32, %arg2: memref<1x8x16xf32, #tpu.memory_space<vmem>>, %arg3: memref<1x8x1xf32, #tpu.memory_space<vmem>>, %arg4: memref<1x8x1xf32, #tpu.memory_space<vmem>>, %arg5: memref<1x8x16xf32, #tpu.memory_space<vmem>>) attributes {dimension_semantics = [#tpu.dimension_semantics<parallel>, #tpu.dimension_semantics<parallel>], iteration_bounds = array<i64: 2, 1>, scalar_prefetch = 0 : i64, scratch_operands = 0 : i64, tpu.core_type = #tpu.core_type<tc>, window_params = [{transform_indices = @transform_0, window_bounds = array<i64: 1, 8, 16>}, {pipeline_mode = #tpu.pipeline_mode<synchronous>, transform_indices = @transform_1, window_bounds = array<i64: 1, 8, 1>}, {pipeline_mode = #tpu.pipeline_mode<synchronous>, transform_indices = @transform_2, window_bounds = array<i64: 1, 8, 1>}, {transform_indices = @transform_3, window_bounds = array<i64: 1, 8, 16>}]} {
    %c0 = arith.constant 0 : index
    %c0_0 = arith.constant 0 : index
    %c0_1 = arith.constant 0 : index
    %0 = vector.load %arg2[%c0, %c0_0, %c0_1] : memref<1x8x16xf32, #tpu.memory_space<vmem>>, vector<1x8x16xf32>
    %1 = vector.shape_cast %0 : vector<1x8x16xf32> to vector<8x16xf32>
    %c0_2 = arith.constant 0 : index
    %c0_3 = arith.constant 0 : index
    %c0_4 = arith.constant 0 : index
    %2 = vector.load %arg3[%c0_2, %c0_3, %c0_4] : memref<1x8x1xf32, #tpu.memory_space<vmem>>, vector<1x8x1xf32>
    %3 = vector.shape_cast %2 : vector<1x8x1xf32> to vector<8x1xf32>
    %4 = vector.broadcast %3 : vector<8x1xf32> to vector<8x16xf32>
    %5 = arith.mulf %1, %4 : vector<8x16xf32>
    %c0_5 = arith.constant 0 : index
    %c0_6 = arith.constant 0 : index
    %c0_7 = arith.constant 0 : index
    %6 = vector.load %arg4[%c0_5, %c0_6, %c0_7] : memref<1x8x1xf32, #tpu.memory_space<vmem>>, vector<1x8x1xf32>
    %7 = vector.shape_cast %6 : vector<1x8x1xf32> to vector<8x1xf32>
    %8 = vector.broadcast %7 : vector<8x1xf32> to vector<8x16xf32>
    %9 = arith.addf %5, %8 : vector<8x16xf32>
    %cst = arith.constant 0.000000e+00 : f32
    %10 = vector.broadcast %cst : f32 to vector<8x16xf32>
    %11 = arith.maximumf %9, %10 : vector<8x16xf32>
    %c0_8 = arith.constant 0 : index
    %c0_9 = arith.constant 0 : index
    %c0_10 = arith.constant 0 : index
    %12 = vector.load %arg5[%c0_8, %c0_9, %c0_10] : memref<1x8x16xf32, #tpu.memory_space<vmem>>, vector<1x8x16xf32>
    %13 = vector.shape_cast %12 : vector<1x8x16xf32> to vector<8x16xf32>
    %14 = vector.shape_cast %11 : vector<8x16xf32> to vector<1x8x16xf32>
    tpu.vector_store %arg5[%c0_8, %c0_9, %c0_10], %14 {strides = array<i32>} : memref<1x8x16xf32, #tpu.memory_space<vmem>>, vector<1x8x16xf32>,
    return
  }
  func.func @transform_0(%arg0: i32, %arg1: i32) -> (i32, i32, i32) {
    %c0_i32 = arith.constant 0 : i32
    %c0_i32_0 = arith.constant 0 : i32
    return %arg0, %c0_i32, %arg1 : i32, i32, i32
  }
  func.func @transform_1(%arg0: i32, %arg1: i32) -> (i32, i32, i32) {
    %c0_i32 = arith.constant 0 : i32
    %c0_i32_0 = arith.constant 0 : i32
    %c0_i32_1 = arith.constant 0 : i32
    %c0_i32_2 = arith.constant 0 : i32
    return %c0_i32, %c0_i32_0, %c0_i32_1 : i32, i32, i32
  }
  func.func @transform_2(%arg0: i32, %arg1: i32) -> (i32, i32, i32) {
    %c0_i32 = arith.constant 0 : i32
    %c0_i32_0 = arith.constant 0 : i32
    %c0_i32_1 = arith.constant 0 : i32
    %c0_i32_2 = arith.constant 0 : i32
    return %c0_i32, %c0_i32_0, %c0_i32_1 : i32, i32, i32
  }
  func.func @transform_3(%arg0: i32, %arg1: i32) -> (i32, i32, i32) {
    %c0_i32 = arith.constant 0 : i32
    %c0_i32_0 = arith.constant 0 : i32
    return %arg0, %c0_i32, %arg1 : i32, i32, i32
  }
}

</mosaic_0001>

<llo_original>
// kernel: block_forward.2
$region0: #{block_forward.2}
  #allocation0 [shape = 'u32[]', space=smem, size = 0x4, offset = 0x4, fixed_abs, tag = 'smem constant byte address 0x4 - core index']
  #allocation1 [shape = 'u32[72,128]{1,0:T(1,128)}', space=vmem, size = 0x9000, scoped, tag = 'internal scratch']
  %s0 = inlined_call_operand.vmem [shape: f32[2,4,18], index: 0, kind: input, shape index: {}]
  %s1 = inlined_call_operand.vmem [shape: f32[3,8,4], index: 1, kind: input, shape index: {}]
  %s2 = inlined_call_operand.vmem [shape: f32[1,8,1], index: 2, kind: input, shape index: {}]
  %s3 = inlined_call_operand.vmem [shape: f32[2,8,16], index: 3, kind: output, shape index: {0}]
  %s4 = inlined_call_operand.vmem [shape: f32[2,8,1], index: 4, kind: output, shape index: {1}]
  %s5 = inlined_call_operand.vmem [shape: f32[2,8,1], index: 5, kind: output, shape index: {2}]
  %6 = xla_tuple %s3, %s4, %s5
  %s7 = sld [smem:[#allocation0]]
  $region61: #{block_forward.2} parent=0
    _
  %s9 = ssub.s32 1, %s7
  %s10 = scalar_select 0, %s9, %s7
  loop: start=0, step=1, limit=4
  $region2: #{block_forward.2} parent=0 // loop_pre_header
    _
  $region3: #{block_forward.2} parent=0 // loop_header
    %s12 = sphi 0, %s16
    %p13 = scmp.ge.s32.totalorder %s12, 4
    %s22 = sphi 0, %s24
    %s25 = sphi 0, %s22
    %s26 = sphi 0, %s25
    %s42 = sphi 0, %s26
    %s46 = sphi 0, %s46
    %s48 = sphi 0, %s46
    %s49 = sphi 0, %s48
    %s63 = sphi 0, %s49
    %s67 = sphi 0, %s67
    %s69 = sphi 0, %s67
    %s70 = sphi 0, %s69
    %s84 = sphi 0, %s70
    %s90 = sphi 0, %s92
    %s93 = sphi 0, %s90
    %s94 = sphi 0, %s93
    %s110 = sphi 0, %s94
    %s116 = sphi 0, %s118
    %s119 = sphi 0, %s116
    %s120 = sphi 0, %s119
    %s136 = sphi 0, %s120
    %s142 = sphi 0, %s144
    %s145 = sphi 0, %s142
    %s146 = sphi 0, %s145
    %s162 = sphi 0, %s146
  $region4: #{block_forward.2} parent=0 // loop_header_branch
    %15 = sbr.rel (%p13) target = $region8
  $region5: #{block_forward.2} parent=0 // loop_body
    %s17 = ssub.s32 %s12, 1
    %s18 = ssub.s32 %s12, 2
    %s19 = sadd.s32 %s12, 1
    %s20 = ssub.s32 %s12, %s19
    %p21 = scmp.eq.s32.totalorder %s20, 0
    %s23 = sadd.s32 %s22, 1
    %s24 = scalar_select %p21, %s22, %s23
    %p27 = pneg %p21
    %p28 = scmp.eq.s32.totalorder %s12, 1
    %p29 = por %p27, %p28
    %p30 = scmp.ne.s32.totalorder %s22, %s25
    %p31 = scmp.eq.s32.totalorder %s12, 0
    %p32 = por %p30, %p31
    %p33 = scmp.ne.s32.totalorder %s22, %s25
    %p34 = scmp.eq.s32.totalorder %s17, 1
    %p35 = por %p33, %p34
    %p36 = scmp.ne.s32.totalorder %s25, %s26
    %p37 = scmp.eq.s32.totalorder %s17, 0
    %p38 = por %p36, %p37
    %p39 = scmp.ne.s32.totalorder %s25, %s26
    %p40 = scmp.eq.s32.totalorder %s18, 1
    %p41 = por %p39, %p40
    %p43 = scmp.ne.s32.totalorder %s26, %s42
    %p44 = scmp.eq.s32.totalorder %s18, 0
    %p45 = por %p43, %p44
    %s47 = sadd.s32 %s46, 1
    %p50 = scmp.eq.s32.totalorder %s12, 1
    %p51 = scmp.ne.s32.totalorder %s46, %s48
    %p52 = scmp.eq.s32.totalorder %s12, 0
    %p53 = por %p51, %p52
    %p54 = scmp.ne.s32.totalorder %s46, %s48
    %p55 = scmp.eq.s32.totalorder %s17, 1
    %p56 = por %p54, %p55
    %p57 = scmp.ne.s32.totalorder %s48, %s49
    %p58 = scmp.eq.s32.totalorder %s17, 0
    %p59 = por %p57, %p58
    %p60 = scmp.ne.s32.totalorder %s48, %s49
    %p61 = scmp.eq.s32.totalorder %s18, 1
    %p62 = por %p60, %p61
    %p64 = scmp.ne.s32.totalorder %s49, %s63
    %p65 = scmp.eq.s32.totalorder %s18, 0
    %p66 = por %p64, %p65
    %s68 = sadd.s32 %s67, 1
    %p71 = scmp.eq.s32.totalorder %s12, 1
    %p72 = scmp.ne.s32.totalorder %s67, %s69
    %p73 = scmp.eq.s32.totalorder %s12, 0
    %p74 = por %p72, %p73
    %p75 = scmp.ne.s32.totalorder %s67, %s69
    %p76 = scmp.eq.s32.totalorder %s17, 1
    %p77 = por %p75, %p76
    %p78 = scmp.ne.s32.totalorder %s69, %s70
    %p79 = scmp.eq.s32.totalorder %s17, 0
    %p80 = por %p78, %p79
    %p81 = scmp.ne.s32.totalorder %s69, %s70
    %p82 = scmp.eq.s32.totalorder %s18, 1
    %p83 = por %p81, %p82
    %p85 = scmp.ne.s32.totalorder %s70, %s84
    %p86 = scmp.eq.s32.totalorder %s18, 0
    %p87 = por %p85, %p86
    %s88 = ssub.s32 %s12, %s19
    %p89 = scmp.eq.s32.totalorder %s88, 0
    %s91 = sadd.s32 %s90, 1
    %s92 = scalar_select %p89, %s90, %s91
    %p95 = pneg %p89
    %p96 = scmp.eq.s32.totalorder %s12, 1
    %p97 = por %p95, %p96
    %p98 = scmp.ne.s32.totalorder %s90, %s93
    %p99 = scmp.eq.s32.totalorder %s12, 0
    %p100 = por %p98, %p99
    %p101 = scmp.ne.s32.totalorder %s90, %s93
    %p102 = scmp.eq.s32.totalorder %s17, 1
    %p103 = por %p101, %p102
    %p104 = scmp.ne.s32.totalorder %s93, %s94
    %p105 = scmp.eq.s32.totalorder %s17, 0
    %p106 = por %p104, %p105
    %p107 = scmp.ne.s32.totalorder %s93, %s94
    %p108 = scmp.eq.s32.totalorder %s18, 1
    %p109 = por %p107, %p108
    %p111 = scmp.ne.s32.totalorder %s94, %s110
    %p112 = scmp.eq.s32.totalorder %s18, 0
    %p113 = por %p111, %p112
    %s114 = ssub.s32 %s12, %s19
    %p115 = scmp.eq.s32.totalorder %s114, 0
    %s117 = sadd.s32 %s116, 1
    %s118 = scalar_select %p115, %s116, %s117
    %p121 = pneg %p115
    %p122 = scmp.eq.s32.totalorder %s12, 1
    %p123 = por %p121, %p122
    %p124 = scmp.ne.s32.totalorder %s116, %s119
    %p125 = scmp.eq.s32.totalorder %s12, 0
    %p126 = por %p124, %p125
    %p127 = scmp.ne.s32.totalorder %s116, %s119
    %p128 = scmp.eq.s32.totalorder %s17, 1
    %p129 = por %p127, %p128
    %p130 = scmp.ne.s32.totalorder %s119, %s120
    %p131 = scmp.eq.s32.totalorder %s17, 0
    %p132 = por %p130, %p131
    %p133 = scmp.ne.s32.totalorder %s119, %s120
    %p134 = scmp.eq.s32.totalorder %s18, 1
    %p135 = por %p133, %p134
    %p137 = scmp.ne.s32.totalorder %s120, %s136
    %p138 = scmp.eq.s32.totalorder %s18, 0
    %p139 = por %p137, %p138
    %s140 = ssub.s32 %s12, %s19
    %p141 = scmp.eq.s32.totalorder %s140, 0
    %s143 = sadd.s32 %s142, 1
    %s144 = scalar_select %p141, %s142, %s143
    %p147 = pneg %p141
    %p148 = scmp.eq.s32.totalorder %s12, 1
    %p149 = por %p147, %p148
    %p150 = scmp.ne.s32.totalorder %s142, %s145
    %p151 = scmp.eq.s32.totalorder %s12, 0
    %p152 = por %p150, %p151
    %p153 = scmp.ne.s32.totalorder %s142, %s145
    %p154 = scmp.eq.s32.totalorder %s17, 1
    %p155 = por %p153, %p154
    %p156 = scmp.ne.s32.totalorder %s145, %s146
    %p157 = scmp.eq.s32.totalorder %s17, 0
    %p158 = por %p156, %p157
    %p159 = scmp.ne.s32.totalorder %s145, %s146
    %p160 = scmp.eq.s32.totalorder %s18, 1
    %p161 = por %p159, %p160
    %p163 = scmp.ne.s32.totalorder %s146, %s162
    %p164 = scmp.eq.s32.totalorder %s18, 0
    %p165 = por %p163, %p164
    %p166 = scmp.le.s32.totalorder 1, %s12
    %p167 = scmp.lt.s32.totalorder %s12, 3
    %p168 = pnand %p166, %p167
    %p169 = pneg %p168
    // Predicated region
    $region9: #{block_forward.2} parent=5 // pred_check
      _
    $region10: #{block_forward.2} parent=5 // pred_check_branch
      %171 = sbr.rel (%p168) target = $region12
    $region11: #{block_forward.2} parent=5 // pred_region
      %s172 = ssub.s32 %s12, 1
      // Predicated region
      $region13: #{block_forward.2} parent=11 // pred_check
        %p173 = pneg %p59
      $region14: #{block_forward.2} parent=11 // pred_check_branch
        %175 = sbr.rel (%p173) target = $region16
      $region15: #{block_forward.2} parent=11 // pred_region
        _
      $region16: #{block_forward.2} parent=11 // pred_fallthru
        _
      // Predicated region
      $region17: #{block_forward.2} parent=11 // pred_check
        %p176 = pneg %p80
      $region18: #{block_forward.2} parent=11 // pred_check_branch
        %178 = sbr.rel (%p176) target = $region20
      $region19: #{block_forward.2} parent=11 // pred_region
        _
      $region20: #{block_forward.2} parent=11 // pred_fallthru
        _
    $region12: #{block_forward.2} parent=5 // pred_fallthru
      _
    %p179 = scmp.lt.s32.totalorder %s12, 2
    // Predicated region
    $region21: #{block_forward.2} parent=5 // pred_check
      %p180 = pneg %p179
    $region22: #{block_forward.2} parent=5 // pred_check_branch
      %182 = sbr.rel (%p180) target = $region24
    $region23: #{block_forward.2} parent=5 // pred_region
      // Predicated region
      $region25: #{block_forward.2} parent=23 // pred_check
        %p183 = pneg %p32
      $region26: #{block_forward.2} parent=23 // pred_check_branch
        %185 = sbr.rel (%p183) target = $region28
      $region27: #{block_forward.2} parent=23 // pred_region
        %p186 = scmp.lt.s32.totalorder %s12, 1
        %s187 = scalar_select %p186, %s12, 1
        %s188 = smul.addr %s187, 4
        %s189 = scalar_lea.vmem %s0, %s188
      $region28: #{block_forward.2} parent=23 // pred_fallthru
        _
    $region24: #{block_forward.2} parent=5 // pred_fallthru
      _
    %p190 = scmp.le.s32.totalorder 1, %s12
    %p191 = scmp.lt.s32.totalorder %s12, 3
    %p192 = pnand %p190, %p191
    %p193 = pneg %p192
    // Predicated region
    $region29: #{block_forward.2} parent=5 // pred_check
      _
    $region30: #{block_forward.2} parent=5 // pred_check_branch
      %195 = sbr.rel (%p192) target = $region32
    $region31: #{block_forward.2} parent=5 // pred_region
      %s196 = ssub.s32 %s12, 1
      %p197 = scmp.lt.s32.totalorder %s17, 1
      %s198 = scalar_select %p197, %s17, 1
      %s199 = smul.addr %s198, 4
      %s200 = scalar_lea.vmem %s0, %s199
      %p201 = pneg %p38
      %p202 = pneg %p35
      %p203 = pneg %p59
      %p204 = pneg %p56
      %p205 = pneg %p80
      %p206 = pneg %p77
      %p207 = pneg %p106
      %p208 = pneg %p103
      %p209 = scmp.lt.s32.totalorder %s17, 1
      %s210 = scalar_select %p209, %s17, 1
      %s211 = smul.addr %s210, 8
      %s212 = scalar_lea.vmem %s3, %s211
      %p213 = pneg %p132
      %p214 = pneg %p129
      %p215 = scmp.lt.s32.totalorder %s17, 1
      %s216 = scalar_select %p215, %s17, 1
      %s217 = smul.addr %s216, 8
      %s218 = scalar_lea.vmem %s4, %s217
      %p219 = pneg %p158
      %p220 = pneg %p155
      %p221 = scmp.lt.s32.totalorder %s17, 1
      %s222 = scalar_select %p221, %s17, 1
      %s223 = smul.addr %s222, 8
      %s224 = scalar_lea.vmem %s5, %s223
      %p225 = scmp.lt.s32.totalorder %s17, 1
      %s226 = scalar_select %p225, %s17, 1
      %s227 = smul.addr %s226, 4
      %s228 = scalar_lea.vmem %s0, %s227
      %p229 = scmp.lt.s32.totalorder %s17, 1
      %s230 = scalar_select %p229, %s17, 1
      %s231 = smul.addr %s230, 8
      %s232 = scalar_lea.vmem %s3, %s231
      %p233 = scmp.lt.s32.totalorder %s17, 1
      %s234 = scalar_select %p233, %s17, 1
      %s235 = smul.addr %s234, 8
      %s236 = scalar_lea.vmem %s4, %s235
      %p237 = scmp.lt.s32.totalorder %s17, 1
      %s238 = scalar_select %p237, %s17, 1
      %s239 = smul.addr %s238, 8
      %s240 = scalar_lea.vmem %s5, %s239
      %v241 = vld [vmem:[%s228] sm:$0xf]
      %v242 = vld [vmem:[%s1] sm:$0xff]
      %s243 = scalar_lea.vmem %s1, 8
      %v244 = vld [vmem:[%s243] sm:$0xff]
      %246 = vrot.lane.b32.xlu0 %v241, 127
      %v247 = vpop.permute.xlu0 %246
      %vm248 = vcmask 31744
      %v250 = vsel %vm248, %v244, 0
      %vm252 = vcmask 1043456
      %v253 = vsel %vm252, %v247, 0
      %255 = vmatpush.msra.mxu0 0.0
      %256 = vmatpush.msra.mxu0 0.0
      %257 = vmatpush.msra.mxu0 0.0
      %258 = vmatpush.msra.mxu0 0.0
      %259 = vmatpush.msra.mxu0 0.0
      %260 = vmatpush.msra.mxu0 0.0
      %261 = vmatpush.msra.mxu0 0.0
      %262 = vmatpush.msra.mxu0 0.0
      %263 = vmatpush.msra.mxu0 0.0
      %264 = vmatpush.msra.mxu0 0.0
      %265 = vmatpush.msra.mxu0 0.0
      %266 = vmatpush.msra.mxu0 0.0
      %267 = vmatpush.msra.mxu0 0.0
      %268 = vmatpush.msra.mxu0 0.0
      %269 = vmatpush.msra.mxu0 0.0
      %270 = vmatpush.msra.mxu0 %v253
      %271 = vmatmul.f32.gmra.mxu0 %v250
      %v272 = vpop.f32.mrf.mxu0
      %v273 = vadd.f32 0.0, %v272
      %274 = vdwg.mxu0
      %v276 = vsel %vm248, %v242, 0
      %v278 = vsel %vm252, %v241, 0
      %280 = vmatpush.msra.mxu0 0.0
      %281 = vmatpush.msra.mxu0 0.0
      %282 = vmatpush.msra.mxu0 0.0
      %283 = vmatpush.msra.mxu0 0.0
      %284 = vmatpush.msra.mxu0 0.0
      %285 = vmatpush.msra.mxu0 0.0
      %286 = vmatpush.msra.mxu0 0.0
      %287 = vmatpush.msra.mxu0 0.0
      %288 = vmatpush.msra.mxu0 0.0
      %289 = vmatpush.msra.mxu0 0.0
      %290 = vmatpush.msra.mxu0 0.0
      %291 = vmatpush.msra.mxu0 0.0
      %292 = vmatpush.msra.mxu0 0.0
      %293 = vmatpush.msra.mxu0 0.0
      %294 = vmatpush.msra.mxu0 0.0
      %295 = vmatpush.msra.mxu0 %v278
      %296 = vmatmul.f32.gmra.mxu0 %v276
      %v297 = vpop.f32.mrf.mxu0
      %v298 = vadd.f32 %v273, %v297
      %299 = vdwg.mxu0
      %s300 = scalar_lea.vmem %s1, 16
      %v301 = vld [vmem:[%s300] sm:$0xff]
      %302 = vrot.lane.b32.xlu0 %v241, 126
      %v303 = vpop.permute.xlu0 %302
      %v305 = vsel %vm248, %v301, 0
      %v307 = vsel %vm252, %v303, 0
      %309 = vmatpush.msra.mxu0 0.0
      %310 = vmatpush.msra.mxu0 0.0
      %311 = vmatpush.msra.mxu0 0.0
      %312 = vmatpush.msra.mxu0 0.0
      %313 = vmatpush.msra.mxu0 0.0
      %314 = vmatpush.msra.mxu0 0.0
      %315 = vmatpush.msra.mxu0 0.0
      %316 = vmatpush.msra.mxu0 0.0
      %317 = vmatpush.msra.mxu0 0.0
      %318 = vmatpush.msra.mxu0 0.0
      %319 = vmatpush.msra.mxu0 0.0
      %320 = vmatpush.msra.mxu0 0.0
      %321 = vmatpush.msra.mxu0 0.0
      %322 = vmatpush.msra.mxu0 0.0
      %323 = vmatpush.msra.mxu0 0.0
      %324 = vmatpush.msra.mxu0 %v307
      %325 = vmatmul.f32.gmra.mxu0 %v305
      %v326 = vpop.f32.mrf.mxu0
      %v327 = vadd.f32 0.0, %v326
      %328 = vdwg.mxu0
      %v329 = vadd.f32 %v298, %v327
      %v330 = vld [vmem:[%s2] sm:$0xff]
      %332 = vset.pattern.permute.xlu0 0
      %333 = vperm.xlu0 %332, %v330
      %v334 = vpop.permute.xlu0 %333
      %v336 = vadd.f32 %v329, %v334
      %vm337 = vcmask 130048
      %338 = vst.msk [vmem:[%s232] sm:$0xff] %vm337, %v336
      %v339 = vsel %vm337, %v336, 0.0
      %340 = vadd.xlane.f32.xlu0 %v339
      %v341 = vpop.xlane.xlu0 %340
      %vm342 = vcmask 7168
      %343 = vst.msk [vmem:[%s236] sm:$0xff] %vm342, %v341
      %v344 = vmul.f32 %v336, %v336
      %v345 = vsel %vm337, %v344, 0.0
      %346 = vadd.xlane.f32.xlu0 %v345
      %v347 = vpop.xlane.xlu0 %346
      %348 = vst.msk [vmem:[%s240] sm:$0xff] %vm342, %v347
      %p349 = scmp.lt.s32.totalorder %s17, 1
      %s350 = scalar_select %p349, %s17, 1
      %s351 = smul.addr %s350, 8
      %s352 = scalar_lea.vmem %s3, %s351
      %p353 = scmp.lt.s32.totalorder %s17, 1
      %s354 = scalar_select %p353, %s17, 1
      %s355 = smul.addr %s354, 8
      %s356 = scalar_lea.vmem %s4, %s355
      %p357 = scmp.lt.s32.totalorder %s17, 1
      %s358 = scalar_select %p357, %s17, 1
      %s359 = smul.addr %s358, 8
      %s360 = scalar_lea.vmem %s5, %s359
      // Predicated region
      $region33: #{block_forward.2} parent=31 // pred_check
        %p361 = pneg %p103
      $region34: #{block_forward.2} parent=31 // pred_check_branch
        %363 = sbr.rel (%p361) target = $region36
      $region35: #{block_forward.2} parent=31 // pred_region
        _
      $region36: #{block_forward.2} parent=31 // pred_fallthru
        _
      // Predicated region
      $region37: #{block_forward.2} parent=31 // pred_check
        %p364 = pneg %p129
      $region38: #{block_forward.2} parent=31 // pred_check_branch
        %366 = sbr.rel (%p364) target = $region40
      $region39: #{block_forward.2} parent=31 // pred_region
        _
      $region40: #{block_forward.2} parent=31 // pred_fallthru
        _
      // Predicated region
      $region41: #{block_forward.2} parent=31 // pred_check
        %p367 = pneg %p155
      $region42: #{block_forward.2} parent=31 // pred_check_branch
        %369 = sbr.rel (%p367) target = $region44
      $region43: #{block_forward.2} parent=31 // pred_region
        _
      $region44: #{block_forward.2} parent=31 // pred_fallthru
        _
    $region32: #{block_forward.2} parent=5 // pred_fallthru
      _
    %p370 = scmp.le.s32.totalorder 2, %s12
    // Predicated region
    $region45: #{block_forward.2} parent=5 // pred_check
      %p371 = pneg %p370
    $region46: #{block_forward.2} parent=5 // pred_check_branch
      %373 = sbr.rel (%p371) target = $region48
    $region47: #{block_forward.2} parent=5 // pred_region
      %s374 = ssub.s32 %s12, 2
      // Predicated region
      $region49: #{block_forward.2} parent=47 // pred_check
        %p375 = pneg %p109
      $region50: #{block_forward.2} parent=47 // pred_check_branch
        %377 = sbr.rel (%p375) target = $region52
      $region51: #{block_forward.2} parent=47 // pred_region
        %p378 = scmp.lt.s32.totalorder %s18, 1
        %s379 = scalar_select %p378, %s18, 1
        %s380 = smul.addr %s379, 8
        %s381 = scalar_lea.vmem %s3, %s380
      $region52: #{block_forward.2} parent=47 // pred_fallthru
        _
      // Predicated region
      $region53: #{block_forward.2} parent=47 // pred_check
        %p382 = pneg %p135
      $region54: #{block_forward.2} parent=47 // pred_check_branch
        %384 = sbr.rel (%p382) target = $region56
      $region55: #{block_forward.2} parent=47 // pred_region
        %p385 = scmp.lt.s32.totalorder %s18, 1
        %s386 = scalar_select %p385, %s18, 1
        %s387 = smul.addr %s386, 8
        %s388 = scalar_lea.vmem %s4, %s387
      $region56: #{block_forward.2} parent=47 // pred_fallthru
        _
      // Predicated region
      $region57: #{block_forward.2} parent=47 // pred_check
        %p389 = pneg %p161
      $region58: #{block_forward.2} parent=47 // pred_check_branch
        %391 = sbr.rel (%p389) target = $region60
      $region59: #{block_forward.2} parent=47 // pred_region
        %p392 = scmp.lt.s32.totalorder %s18, 1
        %s393 = scalar_select %p392, %s18, 1
        %s394 = smul.addr %s393, 8
        %s395 = scalar_lea.vmem %s5, %s394
      $region60: #{block_forward.2} parent=47 // pred_fallthru
        _
    $region48: #{block_forward.2} parent=5 // pred_fallthru
      _
  $region6: #{block_forward.2} parent=0 // loop_footer
    %s16 = sadd.s32 1, %s12
  $region7: #{block_forward.2} parent=0 // loop_footer_branch
    %11 = sbr.rel target = $region3
  $region8: #{block_forward.2} parent=0 // loop_exit
    _

// kernel: block_forward.3
$region0: #{block_forward.3}
  #allocation0 [shape = 'u32[]', space=smem, size = 0x4, offset = 0x4, fixed_abs, tag = 'smem constant byte address 0x4 - core index']
  #allocation1 [shape = 'u32[72,128]{1,0:T(1,128)}', space=vmem, size = 0x9000, scoped, tag = 'internal scratch']
  %s0 = inlined_call_operand.vmem [shape: f32[2,8,16], index: 0, kind: input, shape index: {}]
  %s1 = inlined_call_operand.vmem [shape: f32[1,8,1], index: 1, kind: input, shape index: {}]
  %s2 = inlined_call_operand.vmem [shape: f32[1,8,1], index: 2, kind: input, shape index: {}]
  %s3 = inlined_call_operand.hbm [shape: f32[2,8,16], index: 3, kind: output, shape index: {}]
  %s4 = sld [smem:[#allocation0]]
  $region45: #{block_forward.3} parent=0
    _
  %s6 = ssub.s32 1, %s4
  %s7 = scalar_select 0, %s6, %s4
  $region1: #{block_forward.3} parent=0
    #allocation2 [shape = 'u8[8192]{0}', space=vmem, size = 0x2000, scoped, tag = 'output window, operand 0']
    #allocation3 [shape = 's32[2]{0}', space=sflag, size = 0x8, scoped, tag = 'scoped memory for block_forward.3']
    %8 = vsyncpa [#allocation3], 0
    %s9 = scalar_lea.sflag [#allocation3], 1
    %10 = vsyncpa %s9, 0
    loop: start=0, step=1, limit=4
    $region2: #{block_forward.3} parent=1 // loop_pre_header
      _
    $region3: #{block_forward.3} parent=1 // loop_header
      %s12 = sphi 0, %s16
      %p13 = scmp.ge.s32.totalorder %s12, 4
      %s19 = sphi 0, %s31
      %s20 = sphi 0, %s27
      %s21 = sphi 0, %s19
      %s22 = sphi 0, %s20
      %s23 = sphi 0, %s21
      %s24 = sphi 0, %s22
      %s36 = sphi 0, %s38
      %s39 = sphi 0, %s36
      %s40 = sphi 0, %s39
      %s56 = sphi 0, %s40
      %s60 = sphi 0, %s60
      %s62 = sphi 0, %s60
      %s63 = sphi 0, %s62
      %s77 = sphi 0, %s63
      %s81 = sphi 0, %s81
      %s83 = sphi 0, %s81
      %s84 = sphi 0, %s83
      %s98 = sphi 0, %s84
      %s106 = sphi 0, %s108
      %s109 = sphi 0, %s106
      %s110 = sphi 0, %s109
      %s126 = sphi 0, %s110
    $region4: #{block_forward.3} parent=1 // loop_header_branch
      %15 = sbr.rel (%p13) target = $region8
    $region5: #{block_forward.3} parent=1 // loop_body
      %s17 = ssub.s32 %s12, 1
      %s18 = ssub.s32 %s12, 2
      %s25 = sadd.s32 1, %s20
      %p26 = scmp.ge.s32.totalorder %s25, 1
      %s27 = scalar_select %p26, 0, %s25
      %s28 = sadd.s32 1, %s19
      %s29 = scalar_select %p26, %s28, %s19
      %p30 = scmp.ge.s32.totalorder %s29, 2
      %s31 = scalar_select %p30, 0, %s29
      %s32 = ssub.s32 %s19, %s31
      %s33 = ssub.s32 %s20, %s27
      %s34 = sor.u32 %s32, %s33
      %p35 = scmp.eq.s32.totalorder %s34, 0
      %s37 = sadd.s32 %s36, 1
      %s38 = scalar_select %p35, %s36, %s37
      %p41 = pneg %p35
      %p42 = scmp.eq.s32.totalorder %s12, 1
      %p43 = por %p41, %p42
      %p44 = scmp.ne.s32.totalorder %s36, %s39
      %p45 = scmp.eq.s32.totalorder %s12, 0
      %p46 = por %p44, %p45
      %p47 = scmp.ne.s32.totalorder %s36, %s39
      %p48 = scmp.eq.s32.totalorder %s17, 1
      %p49 = por %p47, %p48
      %p50 = scmp.ne.s32.totalorder %s39, %s40
      %p51 = scmp.eq.s32.totalorder %s17, 0
      %p52 = por %p50, %p51
      %p53 = scmp.ne.s32.totalorder %s39, %s40
      %p54 = scmp.eq.s32.totalorder %s18, 1
      %p55 = por %p53, %p54
      %p57 = scmp.ne.s32.totalorder %s40, %s56
      %p58 = scmp.eq.s32.totalorder %s18, 0
      %p59 = por %p57, %p58
      %s61 = sadd.s32 %s60, 1
      %p64 = scmp.eq.s32.totalorder %s12, 1
      %p65 = scmp.ne.s32.totalorder %s60, %s62
      %p66 = scmp.eq.s32.totalorder %s12, 0
      %p67 = por %p65, %p66
      %p68 = scmp.ne.s32.totalorder %s60, %s62
      %p69 = scmp.eq.s32.totalorder %s17, 1
      %p70 = por %p68, %p69
      %p71 = scmp.ne.s32.totalorder %s62, %s63
      %p72 = scmp.eq.s32.totalorder %s17, 0
      %p73 = por %p71, %p72
      %p74 = scmp.ne.s32.totalorder %s62, %s63
      %p75 = scmp.eq.s32.totalorder %s18, 1
      %p76 = por %p74, %p75
      %p78 = scmp.ne.s32.totalorder %s63, %s77
      %p79 = scmp.eq.s32.totalorder %s18, 0
      %p80 = por %p78, %p79
      %s82 = sadd.s32 %s81, 1
      %p85 = scmp.eq.s32.totalorder %s12, 1
      %p86 = scmp.ne.s32.totalorder %s81, %s83
      %p87 = scmp.eq.s32.totalorder %s12, 0
      %p88 = por %p86, %p87
      %p89 = scmp.ne.s32.totalorder %s81, %s83
      %p90 = scmp.eq.s32.totalorder %s17, 1
      %p91 = por %p89, %p90
      %p92 = scmp.ne.s32.totalorder %s83, %s84
      %p93 = scmp.eq.s32.totalorder %s17, 0
      %p94 = por %p92, %p93
      %p95 = scmp.ne.s32.totalorder %s83, %s84
      %p96 = scmp.eq.s32.totalorder %s18, 1
      %p97 = por %p95, %p96
      %p99 = scmp.ne.s32.totalorder %s84, %s98
      %p100 = scmp.eq.s32.totalorder %s18, 0
      %p101 = por %p99, %p100
      %s102 = ssub.s32 %s19, %s31
      %s103 = ssub.s32 %s20, %s27
      %s104 = sor.u32 %s102, %s103
      %p105 = scmp.eq.s32.totalorder %s104, 0
      %s107 = sadd.s32 %s106, 1
      %s108 = scalar_select %p105, %s106, %s107
      %p111 = pneg %p105
      %p112 = scmp.eq.s32.totalorder %s12, 1
      %p113 = por %p111, %p112
      %p114 = scmp.ne.s32.totalorder %s106, %s109
      %p115 = scmp.eq.s32.totalorder %s12, 0
      %p116 = por %p114, %p115
      %p117 = scmp.ne.s32.totalorder %s106, %s109
      %p118 = scmp.eq.s32.totalorder %s17, 1
      %p119 = por %p117, %p118
      %p120 = scmp.ne.s32.totalorder %s109, %s110
      %p121 = scmp.eq.s32.totalorder %s17, 0
      %p122 = por %p120, %p121
      %p123 = scmp.ne.s32.totalorder %s109, %s110
      %p124 = scmp.eq.s32.totalorder %s18, 1
      %p125 = por %p123, %p124
      %p127 = scmp.ne.s32.totalorder %s110, %s126
      %p128 = scmp.eq.s32.totalorder %s18, 0
      %p129 = por %p127, %p128
      %p130 = scmp.le.s32.totalorder 1, %s12
      %p131 = scmp.lt.s32.totalorder %s12, 3
      %p132 = pnand %p130, %p131
      %p133 = pneg %p132
      // Predicated region
      $region9: #{block_forward.3} parent=5 // pred_check
        _
      $region10: #{block_forward.3} parent=5 // pred_check_branch
        %135 = sbr.rel (%p132) target = $region12
      $region11: #{block_forward.3} parent=5 // pred_region
        %s136 = ssub.s32 %s12, 1
        // Predicated region
        $region13: #{block_forward.3} parent=11 // pred_check
          %p137 = pneg %p73
        $region14: #{block_forward.3} parent=11 // pred_check_branch
          %139 = sbr.rel (%p137) target = $region16
        $region15: #{block_forward.3} parent=11 // pred_region
          _
        $region16: #{block_forward.3} parent=11 // pred_fallthru
          _
        // Predicated region
        $region17: #{block_forward.3} parent=11 // pred_check
          %p140 = pneg %p94
        $region18: #{block_forward.3} parent=11 // pred_check_branch
          %142 = sbr.rel (%p140) target = $region20
        $region19: #{block_forward.3} parent=11 // pred_region
          _
        $region20: #{block_forward.3} parent=11 // pred_fallthru
          _
      $region12: #{block_forward.3} parent=5 // pred_fallthru
        _
      %p143 = scmp.lt.s32.totalorder %s12, 2
      // Predicated region
      $region21: #{block_forward.3} parent=5 // pred_check
        %p144 = pneg %p143
      $region22: #{block_forward.3} parent=5 // pred_check_branch
        %146 = sbr.rel (%p144) target = $region24
      $region23: #{block_forward.3} parent=5 // pred_region
        // Predicated region
        $region25: #{block_forward.3} parent=23 // pred_check
          %p147 = pneg %p46
        $region26: #{block_forward.3} parent=23 // pred_check_branch
          %149 = sbr.rel (%p147) target = $region28
        $region27: #{block_forward.3} parent=23 // pred_region
          %p150 = scmp.lt.s32.totalorder %s19, 1
          %s151 = scalar_select %p150, %s19, 1
          %p152 = scmp.lt.s32.totalorder %s20, 0
          %s153 = scalar_select %p152, %s20, 0
          %s154 = sadd.s32 %s153, %s151
          %s155 = smul.addr %s154, 8
          %s156 = scalar_lea.vmem %s0, %s155
        $region28: #{block_forward.3} parent=23 // pred_fallthru
          _
      $region24: #{block_forward.3} parent=5 // pred_fallthru
        _
      %p157 = scmp.le.s32.totalorder 1, %s12
      %p158 = scmp.lt.s32.totalorder %s12, 3
      %p159 = pnand %p157, %p158
      %p160 = pneg %p159
      // Predicated region
      $region29: #{block_forward.3} parent=5 // pred_check
        _
      $region30: #{block_forward.3} parent=5 // pred_check_branch
        %162 = sbr.rel (%p159) target = $region32
      $region31: #{block_forward.3} parent=5 // pred_region
        %s163 = ssub.s32 %s12, 1
        %p164 = scmp.lt.s32.totalorder %s21, 1
        %s165 = scalar_select %p164, %s21, 1
        %p166 = scmp.lt.s32.totalorder %s22, 0
        %s167 = scalar_select %p166, %s22, 0
        %s168 = sadd.s32 %s167, %s165
        %s169 = smul.addr %s168, 8
        %s170 = scalar_lea.vmem %s0, %s169
        %p171 = pneg %p52
        %p172 = pneg %p49
        %p173 = pneg %p73
        %p174 = pneg %p70
        %p175 = pneg %p94
        %p176 = pneg %p91
        %p177 = pneg %p122
        %p178 = pneg %p119
        %s179 = sand.u32 %s109, 1
        %s180 = scalar_lea.sflag [#allocation3], %s179
        %s181 = sand.u32 %s109, 1
        %s182 = smul.addr %s181, 8
        %s183 = scalar_lea.vmem [#allocation2], %s182
        %p184 = scmp.lt.s32.totalorder %s21, 1
        %s185 = scalar_select %p184, %s21, 1
        %p186 = scmp.lt.s32.totalorder %s22, 0
        %s187 = scalar_select %p186, %s22, 0
        %s188 = sadd.s32 %s187, %s185
        %s189 = smul.addr %s188, 8
        %s190 = scalar_lea.vmem %s0, %s189
        %v191 = vld [vmem:[%s190] sm:$0xff]
        %v192 = vld [vmem:[%s1] sm:$0xff]
        %194 = vset.pattern.permute.xlu0 0
        %195 = vperm.xlu0 %194, %v192
        %v196 = vpop.permute.xlu0 %195
        %v198 = vmul.f32 %v191, %v196
        %v199 = vld [vmem:[%s2] sm:$0xff]
        %201 = vset.pattern.permute.xlu0 0
        %202 = vperm.xlu0 %201, %v199
        %v203 = vpop.permute.xlu0 %202
        %v205 = vadd.f32 %v198, %v203
        %v206 = vmax.f32 %v205, 0.0
        %vm207 = vcmask 130048
        %208 = vst.msk [vmem:[%s183] sm:$0xff] %vm207, %v206
        %s209 = sand.u32 %s109, 1
        %s210 = scalar_lea.sflag [#allocation3], %s209
        %s211 = sand.u32 %s109, 1
        %s212 = smul.addr %s211, 8
        %s213 = scalar_lea.vmem [#allocation2], %s212
        // Predicated region
        $region33: #{block_forward.3} parent=31 // pred_check
          %p214 = pneg %p119
        $region34: #{block_forward.3} parent=31 // pred_check_branch
          %216 = sbr.rel (%p214) target = $region36
        $region35: #{block_forward.3} parent=31 // pred_region
          %218 = vsyncadd %s210, 0
          %s219 = sadd.s32 %s22, %s21
          %s220 = smul.addr %s219, 8
          %s221 = scalar_lea.hbm %s3, %s220
          %s223 = sshll.u32 %s213, 4
          %s224 = int_to_ptr.vmem [resolvable:$true] %s223
          %s225 = sshll.u32 %s221, 4
          %s226 = int_to_ptr.hbm [resolvable:$true] %s225
          %228 = dma.vmem_to_hbm [thread:$0]  %s224, 128, %s226, %s210
        $region36: #{block_forward.3} parent=31 // pred_fallthru
          _
      $region32: #{block_forward.3} parent=5 // pred_fallthru
        _
      %p229 = scmp.le.s32.totalorder 2, %s12
      // Predicated region
      $region37: #{block_forward.3} parent=5 // pred_check
        %p230 = pneg %p229
      $region38: #{block_forward.3} parent=5 // pred_check_branch
        %232 = sbr.rel (%p230) target = $region40
      $region39: #{block_forward.3} parent=5 // pred_region
        %s233 = ssub.s32 %s12, 2
        // Predicated region
        $region41: #{block_forward.3} parent=39 // pred_check
          %p234 = pneg %p125
        $region42: #{block_forward.3} parent=39 // pred_check_branch
          %236 = sbr.rel (%p234) target = $region44
        $region43: #{block_forward.3} parent=39 // pred_region
          %s237 = sand.u32 %s110, 1
          %s238 = scalar_lea.sflag [#allocation3], %s237
          %s239 = sand.u32 %s110, 1
          %s240 = smul.addr %s239, 8
          %s241 = scalar_lea.vmem [#allocation2], %s240
          %243 = dma.done %s238, 128
        $region44: #{block_forward.3} parent=39 // pred_fallthru
          _
      $region40: #{block_forward.3} parent=5 // pred_fallthru
        _
    $region6: #{block_forward.3} parent=1 // loop_footer
      %s16 = sadd.s32 1, %s12
    $region7: #{block_forward.3} parent=1 // loop_footer_branch
      %11 = sbr.rel target = $region3
    $region8: #{block_forward.3} parent=1 // loop_exit
      _
    %244 = vsyncpa [#allocation3], 1
    %s245 = scalar_lea.sflag [#allocation3], 1
    %246 = vsyncpa %s245, 1

</llo_original>
